<compile_context>
chip_gen: v7x
topology: tpu7x:2x2x1
jax: 0.10.0
libtpu: 0.0.40
codegen_flags: <defaults>
</compile_context>

<pallas_src>
import jax
import jax.numpy as jnp
from jax.experimental import pallas as pl
from jax.experimental.pallas import tpu as pltpu


def _round_up(n, m):
    return ((n + m - 1) // m) * m


def _make_mlp_kernel(layer_out_sizes):
    """Build a fused feature-major MLP kernel for the given layer widths.

    Kernel refs: (x_T, W_0, ..., W_L, b_cat, out_T) with
      x_T   : (in_size, TM)            compute dtype
      W_l   : (out_l, in_l)            compute dtype (PyTorch layout)
      b_cat : (sum(layer_out_sizes),1) float32
      out_T : (out_size, TM)           float32
    Hidden layers use ReLU, output layer Identity (module defaults).
    """
    n_layers = len(layer_out_sizes)
    offsets = [0]
    for s in layer_out_sizes:
        offsets.append(offsets[-1] + s)

    def kernel(*refs):
        x_ref = refs[0]
        w_refs = refs[1:1 + n_layers]
        b_ref = refs[1 + n_layers]
        o_ref = refs[2 + n_layers]

        b_all = b_ref[...]            # (sum(sizes), 1) f32, broadcasts over lanes
        act = x_ref[...]              # (in_size, TM) compute dtype
        for l in range(n_layers):
            b_l = b_all[offsets[l]:offsets[l + 1]]                     # (size_l, 1)
            z = jnp.dot(w_refs[l][...], act,
                        preferred_element_type=jnp.float32) + b_l      # f32 epilogue
            if l < n_layers - 1:
                act = jnp.maximum(z, 0.0).astype(x_ref.dtype)          # ReLU hidden
            else:
                o_ref[...] = z.astype(o_ref.dtype)                     # Identity out
    return kernel


def nn_backprop_forward(x, params, *, tm=512, compute_dtype=jnp.bfloat16,
                        min_pallas_batch=0):
    """Fused forward pass of NNBackprop.

    params = [(W1, b1), ..., (Wo, bo)] with PyTorch Linear shapes
    W: (out_features, in_features), b: (out_features,).
    """
    x = jnp.asarray(x, dtype=jnp.float32)   # mirrors torch.tensor(x, dtype=torch.float)
    batch, in_size = x.shape
    ws = [jnp.asarray(w, jnp.float32) for w, _ in params]
    bs = [jnp.asarray(b, jnp.float32) for _, b in params]
    layer_sizes = [w.shape[0] for w in ws]
    out_size = layer_sizes[-1]

    # Tiny problems are pure launch/DMA overhead in Pallas; let XLA fuse them.
    if batch < min_pallas_batch:
        return reference_forward(x, params, compute_dtype=compute_dtype)

    # Lane-dense, batch-tiled layout: batch on the lane (last) axis, TM a
    # multiple of 128 (>=512 in the large-batch regime ~ 85% of HBM roofline).
    TM = min(_round_up(tm, 128), _round_up(batch, 128))
    padded = _round_up(batch, TM)

    xt = x.T                                        # (in_size, batch)
    if padded != batch:
        xt = jnp.pad(xt, ((0, 0), (0, padded - batch)))
    xt = xt.astype(compute_dtype)                   # halve HBM bytes for x
    w_ops = [w.astype(compute_dtype) for w in ws]   # bf16 weights, f32 MXU accum
    b_cat = jnp.concatenate(bs)[:, None]            # single (sum(sizes), 1) f32 operand

    grid = (padded // TM,)

    def resident(a):   # stays in VMEM across all grid steps
        return pl.BlockSpec(a.shape, lambda i: (0,) * a.ndim)

    in_specs = ([pl.BlockSpec((in_size, TM), lambda i: (0, i))]
                + [resident(w) for w in w_ops]
                + [resident(b_cat)])
    out_specs = pl.BlockSpec((out_size, TM), lambda i: (0, i))

    # Advisory cost estimate for the XLA scheduler.
    flops = 0
    prev = in_size
    for s in layer_sizes:
        flops += 2 * padded * prev * s
        prev = s
    bytes_accessed = (xt.size * xt.dtype.itemsize
                      + sum(w.size * w.dtype.itemsize for w in w_ops)
                      + b_cat.size * b_cat.dtype.itemsize
                      + padded * out_size * 4)

    out_t = pl.pallas_call(
        _make_mlp_kernel(tuple(layer_sizes)),
        out_shape=jax.ShapeDtypeStruct((out_size, padded), jnp.float32),
        grid=grid,
        in_specs=in_specs,
        out_specs=out_specs,
        compiler_params=pltpu.CompilerParams(
            dimension_semantics=("parallel",)),     # shards batch tiles over v7x's 2 TCs
        cost_estimate=pl.CostEstimate(
            flops=flops, transcendentals=0, bytes_accessed=bytes_accessed),
    )(xt, *w_ops, b_cat)

    # Back to PyTorch (batch, out_features) layout; drop the padded rows.
    return out_t[:, :batch].T


def init_params(key, input_size, hidden_sizes, output_size):
    """Deterministic init mimicking PyTorch nn.Linear default:
    U(-1/sqrt(fan_in), 1/sqrt(fan_in)) for both weights and biases."""
    sizes = [input_size] + hidden_sizes + [output_size]
    params = []
    for i in range(len(sizes) - 1):
        fan_in, fan_out = sizes[i], sizes[i + 1]
        key, kw, kb = jax.random.split(key, 3)
        bound = 1.0 / jnp.sqrt(fan_in)
        w = jax.random.uniform(kw, (fan_out, fan_in), jnp.float32, -bound, bound)
        b = jax.random.uniform(kb, (fan_out,), jnp.float32, -bound, bound)
        params.append((w, b))
    return params


def reference_forward(x, params, compute_dtype=jnp.float32):
    """Pure-JAX reference of NNBackprop.forward (ReLU hidden, Identity output).

    With compute_dtype=bfloat16 it applies the same input/weight/activation
    quantization the bf16 kernel path uses (f32 accumulation throughout)."""
    t = jnp.asarray(x, jnp.float32).astype(compute_dtype)
    *hidden, (wo, bo) = params
    for w, b in hidden:
        z = jnp.dot(t, jnp.asarray(w, jnp.float32).T.astype(compute_dtype),
                    preferred_element_type=jnp.float32) + jnp.asarray(b, jnp.float32)
        t = jnp.maximum(z, 0.0).astype(compute_dtype)
    return (jnp.dot(t, jnp.asarray(wo, jnp.float32).T.astype(compute_dtype),
                    preferred_element_type=jnp.float32)
            + jnp.asarray(bo, jnp.float32))


if __name__ == "__main__":
    # Architecture: input 16 -> hidden [32, 32] (ReLU) -> output 4 (Identity),
    # dropout = 0.0 (module default) so no dropout layers.
    input_size, hidden_sizes, output_size = 16, [32, 32], 4
    batch = 300   # deliberately not a multiple of 128 -> exercises padding

    key = jax.random.PRNGKey(0)
    key, kx = jax.random.split(key)
    x = jax.random.normal(kx, (batch, input_size), jnp.float32)
    params = init_params(key, input_size, hidden_sizes, output_size)

    # 1) f32 path with a small tile (tm=128 -> padded 384 -> 3 grid steps):
    #    exercises the multi-step pipelined grid with resident weights.
    out_f32 = jax.block_until_ready(
        nn_backprop_forward(x, params, tm=128, compute_dtype=jnp.float32))
    ref_f32 = reference_forward(x, params, compute_dtype=jnp.float32)
    assert out_f32.shape == (batch, output_size)
    assert jnp.allclose(out_f32, ref_f32, atol=2e-3, rtol=2e-3), "f32 mismatch vs reference"

    # 2) default bf16 path (HBM-bandwidth-bound regime optimization), checked
    #    against a reference that applies the same bf16 quantization.
    out_bf16 = jax.block_until_ready(nn_backprop_forward(x, params))
    ref_bf16 = reference_forward(x, params, compute_dtype=jnp.bfloat16)
    assert out_bf16.shape == (batch, output_size)
    assert jnp.allclose(out_bf16, ref_bf16, atol=5e-2, rtol=5e-2), "bf16 mismatch vs reference"

    print("KERNEL_OK")
</pallas_src>

<mosaic_0001>
module attributes {stable_mosaic.version = 11 : i64} {
  func.func @kernel(%arg0: i32, %arg1: memref<16x128xf32, #tpu.memory_space<vmem>>, %arg2: memref<32x16xf32, #tpu.memory_space<vmem>>, %arg3: memref<32x32xf32, #tpu.memory_space<vmem>>, %arg4: memref<4x32xf32, #tpu.memory_space<vmem>>, %arg5: memref<68x1xf32, #tpu.memory_space<vmem>>, %arg6: memref<4x128xf32, #tpu.memory_space<vmem>>) attributes {dimension_semantics = [#tpu.dimension_semantics<parallel>], iteration_bounds = array<i64: 3>, scalar_prefetch = 0 : i64, scratch_operands = 0 : i64, tpu.core_type = #tpu.core_type<tc>, window_params = [{transform_indices = @transform_0, window_bounds = array<i64: 16, 128>}, {pipeline_mode = #tpu.pipeline_mode<synchronous>, transform_indices = @transform_1, window_bounds = array<i64: 32, 16>}, {pipeline_mode = #tpu.pipeline_mode<synchronous>, transform_indices = @transform_2, window_bounds = array<i64: 32, 32>}, {pipeline_mode = #tpu.pipeline_mode<synchronous>, transform_indices = @transform_3, window_bounds = array<i64: 4, 32>}, {pipeline_mode = #tpu.pipeline_mode<synchronous>, transform_indices = @transform_4, window_bounds = array<i64: 68, 1>}, {transform_indices = @transform_5, window_bounds = array<i64: 4, 128>}]} {
    %c0 = arith.constant 0 : index
    %c0_0 = arith.constant 0 : index
    %0 = vector.load %arg5[%c0, %c0_0] : memref<68x1xf32, #tpu.memory_space<vmem>>, vector<68x1xf32>
    %c0_1 = arith.constant 0 : index
    %c0_2 = arith.constant 0 : index
    %1 = vector.load %arg1[%c0_1, %c0_2] : memref<16x128xf32, #tpu.memory_space<vmem>>, vector<16x128xf32>
    %2 = vector.extract_strided_slice %0 {offsets = [0, 0], sizes = [32, 1], strides = [1, 1]} : vector<68x1xf32> to vector<32x1xf32>
    %c0_3 = arith.constant 0 : index
    %c0_4 = arith.constant 0 : index
    %3 = vector.load %arg2[%c0_3, %c0_4] : memref<32x16xf32, #tpu.memory_space<vmem>>, vector<32x16xf32>
    %cst = arith.constant dense<0.000000e+00> : vector<32x128xf32>
    %4 = tpu.matmul %3, %1, %cst {dimension_numbers = #tpu.dot_dimension_numbers<[1], [0], [0], [1], [0, 0, 1, 1], [], []>} : vector<32x16xf32>, vector<16x128xf32>, vector<32x128xf32> -> vector<32x128xf32>
    %5 = vector.broadcast %2 : vector<32x1xf32> to vector<32x128xf32>
    %6 = arith.addf %4, %5 : vector<32x128xf32>
    %cst_5 = arith.constant 0.000000e+00 : f32
    %7 = vector.broadcast %cst_5 : f32 to vector<32x128xf32>
    %8 = arith.maximumf %6, %7 : vector<32x128xf32>
    %9 = vector.extract_strided_slice %0 {offsets = [32, 0], sizes = [32, 1], strides = [1, 1]} : vector<68x1xf32> to vector<32x1xf32>
    %c0_6 = arith.constant 0 : index
    %c0_7 = arith.constant 0 : index
    %10 = vector.load %arg3[%c0_6, %c0_7] : memref<32x32xf32, #tpu.memory_space<vmem>>, vector<32x32xf32>
    %cst_8 = arith.constant dense<0.000000e+00> : vector<32x128xf32>
    %11 = tpu.matmul %10, %8, %cst_8 {dimension_numbers = #tpu.dot_dimension_numbers<[1], [0], [0], [1], [0, 0, 1, 1], [], []>} : vector<32x32xf32>, vector<32x128xf32>, vector<32x128xf32> -> vector<32x128xf32>
    %12 = vector.broadcast %9 : vector<32x1xf32> to vector<32x128xf32>
    %13 = arith.addf %11, %12 : vector<32x128xf32>
    %cst_9 = arith.constant 0.000000e+00 : f32
    %14 = vector.broadcast %cst_9 : f32 to vector<32x128xf32>
    %15 = arith.maximumf %13, %14 : vector<32x128xf32>
    %16 = vector.extract_strided_slice %0 {offsets = [64, 0], sizes = [4, 1], strides = [1, 1]} : vector<68x1xf32> to vector<4x1xf32>
    %c0_10 = arith.constant 0 : index
    %c0_11 = arith.constant 0 : index
    %17 = vector.load %arg4[%c0_10, %c0_11] : memref<4x32xf32, #tpu.memory_space<vmem>>, vector<4x32xf32>
    %cst_12 = arith.constant dense<0.000000e+00> : vector<4x128xf32>
    %18 = tpu.matmul %17, %15, %cst_12 {dimension_numbers = #tpu.dot_dimension_numbers<[1], [0], [0], [1], [0, 0, 1, 1], [], []>} : vector<4x32xf32>, vector<32x128xf32>, vector<4x128xf32> -> vector<4x128xf32>
    %19 = vector.broadcast %16 : vector<4x1xf32> to vector<4x128xf32>
    %20 = arith.addf %18, %19 : vector<4x128xf32>
    %c0_13 = arith.constant 0 : index
    %c0_14 = arith.constant 0 : index
    %21 = vector.load %arg6[%c0_13, %c0_14] : memref<4x128xf32, #tpu.memory_space<vmem>>, vector<4x128xf32>
    tpu.vector_store %arg6[%c0_13, %c0_14], %20 {strides = array<i32>} : memref<4x128xf32, #tpu.memory_space<vmem>>, vector<4x128xf32>,
    return
  }
  func.func @transform_0(%arg0: i32) -> (i32, i32) {
    %c0_i32 = arith.constant 0 : i32
    %c0_i32_0 = arith.constant 0 : i32
    return %c0_i32, %arg0 : i32, i32
  }
  func.func @transform_1(%arg0: i32) -> (i32, i32) {
    %c0_i32 = arith.constant 0 : i32
    %c0_i32_0 = arith.constant 0 : i32
    %c0_i32_1 = arith.constant 0 : i32
    return %c0_i32, %c0_i32_0 : i32, i32
  }
  func.func @transform_2(%arg0: i32) -> (i32, i32) {
    %c0_i32 = arith.constant 0 : i32
    %c0_i32_0 = arith.constant 0 : i32
    %c0_i32_1 = arith.constant 0 : i32
    return %c0_i32, %c0_i32_0 : i32, i32
  }
  func.func @transform_3(%arg0: i32) -> (i32, i32) {
    %c0_i32 = arith.constant 0 : i32
    %c0_i32_0 = arith.constant 0 : i32
    %c0_i32_1 = arith.constant 0 : i32
    return %c0_i32, %c0_i32_0 : i32, i32
  }
  func.func @transform_4(%arg0: i32) -> (i32, i32) {
    %c0_i32 = arith.constant 0 : i32
    %c0_i32_0 = arith.constant 0 : i32
    %c0_i32_1 = arith.constant 0 : i32
    return %c0_i32, %c0_i32_0 : i32, i32
  }
  func.func @transform_5(%arg0: i32) -> (i32, i32) {
    %c0_i32 = arith.constant 0 : i32
    %c0_i32_0 = arith.constant 0 : i32
    return %c0_i32, %arg0 : i32, i32
  }
}

</mosaic_0001>

<llo_original>
// kernel: tpu_custom_call.1
$region0: #{tpu_custom_call.1}
  #allocation0 [shape = 'u32[]', space=smem, size = 0x4, offset = 0x4, fixed_abs, tag = 'smem constant byte address 0x4 - core index']
  #allocation1 [shape = 'u32[144,128]{1,0:T(1,128)}', space=vmem, size = 0x12000, scoped, tag = 'internal scratch']
  %s0 = inlined_call_operand.vmem [shape: f32[16,384], index: 0, kind: input, shape index: {}]
  %s1 = inlined_call_operand.vmem [shape: f32[32,16], index: 1, kind: input, shape index: {}]
  %s2 = inlined_call_operand.vmem [shape: f32[32,32], index: 2, kind: input, shape index: {}]
  %s3 = inlined_call_operand.vmem [shape: f32[4,32], index: 3, kind: input, shape index: {}]
  %s4 = inlined_call_operand.vmem [shape: f32[68,1], index: 4, kind: input, shape index: {}]
  %s5 = inlined_call_operand.hbm [shape: f32[4,384], index: 5, kind: output, shape index: {}]
  %s6 = sld [smem:[#allocation0]]
  $region91: #{tpu_custom_call.1} parent=0
    _
  %s8 = ssub.s32 1, %s6
  %s9 = scalar_select 0, %s8, %s6
  $region1: #{tpu_custom_call.1} parent=0
    #allocation2 [shape = 'u8[16384]{0}', space=vmem, size = 0x4000, scoped, tag = 'input window, operand 0']
    #allocation3 [shape = 'u8[4096]{0}', space=vmem, size = 0x1000, scoped, tag = 'output window, operand 0']
    #allocation4 [shape = 's32[2]{0}', space=sflag, size = 0x8, scoped, tag = 'scoped memory for tpu_custom_call.1']
    %10 = vsyncpa [#allocation4], 0
    %s11 = scalar_lea.sflag [#allocation4], 1
    %12 = vsyncpa %s11, 0
    loop: start=0, step=1, limit=5
    $region2: #{tpu_custom_call.1} parent=1 // loop_pre_header
      _
    $region3: #{tpu_custom_call.1} parent=1 // loop_header
      %s14 = sphi 0, %s18
      %p15 = scmp.ge.s32.totalorder %s14, 5
      %s24 = sphi 0, %s26
      %s27 = sphi 0, %s24
      %s28 = sphi 0, %s27
      %s44 = sphi 0, %s28
      %s48 = sphi 0, %s48
      %s50 = sphi 0, %s48
      %s51 = sphi 0, %s50
      %s65 = sphi 0, %s51
      %s69 = sphi 0, %s69
      %s71 = sphi 0, %s69
      %s72 = sphi 0, %s71
      %s86 = sphi 0, %s72
      %s90 = sphi 0, %s90
      %s92 = sphi 0, %s90
      %s93 = sphi 0, %s92
      %s107 = sphi 0, %s93
      %s111 = sphi 0, %s111
      %s113 = sphi 0, %s111
      %s114 = sphi 0, %s113
      %s128 = sphi 0, %s114
      %s134 = sphi 0, %s136
      %s137 = sphi 0, %s134
      %s138 = sphi 0, %s137
      %s154 = sphi 0, %s138
    $region4: #{tpu_custom_call.1} parent=1 // loop_header_branch
      %17 = sbr.rel (%p15) target = $region8
    $region5: #{tpu_custom_call.1} parent=1 // loop_body
      %s19 = ssub.s32 %s14, 1
      %s20 = ssub.s32 %s14, 2
      %s21 = sadd.s32 %s14, 1
      %s22 = ssub.s32 %s14, %s21
      %p23 = scmp.eq.s32.totalorder %s22, 0
      %s25 = sadd.s32 %s24, 1
      %s26 = scalar_select %p23, %s24, %s25
      %p29 = pneg %p23
      %p30 = scmp.eq.s32.totalorder %s14, 2
      %p31 = por %p29, %p30
      %p32 = scmp.ne.s32.totalorder %s24, %s27
      %p33 = scmp.eq.s32.totalorder %s14, 0
      %p34 = por %p32, %p33
      %p35 = scmp.ne.s32.totalorder %s24, %s27
      %p36 = scmp.eq.s32.totalorder %s19, 2
      %p37 = por %p35, %p36
      %p38 = scmp.ne.s32.totalorder %s27, %s28
      %p39 = scmp.eq.s32.totalorder %s19, 0
      %p40 = por %p38, %p39
      %p41 = scmp.ne.s32.totalorder %s27, %s28
      %p42 = scmp.eq.s32.totalorder %s20, 2
      %p43 = por %p41, %p42
      %p45 = scmp.ne.s32.totalorder %s28, %s44
      %p46 = scmp.eq.s32.totalorder %s20, 0
      %p47 = por %p45, %p46
      %s49 = sadd.s32 %s48, 1
      %p52 = scmp.eq.s32.totalorder %s14, 2
      %p53 = scmp.ne.s32.totalorder %s48, %s50
      %p54 = scmp.eq.s32.totalorder %s14, 0
      %p55 = por %p53, %p54
      %p56 = scmp.ne.s32.totalorder %s48, %s50
      %p57 = scmp.eq.s32.totalorder %s19, 2
      %p58 = por %p56, %p57
      %p59 = scmp.ne.s32.totalorder %s50, %s51
      %p60 = scmp.eq.s32.totalorder %s19, 0
      %p61 = por %p59, %p60
      %p62 = scmp.ne.s32.totalorder %s50, %s51
      %p63 = scmp.eq.s32.totalorder %s20, 2
      %p64 = por %p62, %p63
      %p66 = scmp.ne.s32.totalorder %s51, %s65
      %p67 = scmp.eq.s32.totalorder %s20, 0
      %p68 = por %p66, %p67
      %s70 = sadd.s32 %s69, 1
      %p73 = scmp.eq.s32.totalorder %s14, 2
      %p74 = scmp.ne.s32.totalorder %s69, %s71
      %p75 = scmp.eq.s32.totalorder %s14, 0
      %p76 = por %p74, %p75
      %p77 = scmp.ne.s32.totalorder %s69, %s71
      %p78 = scmp.eq.s32.totalorder %s19, 2
      %p79 = por %p77, %p78
      %p80 = scmp.ne.s32.totalorder %s71, %s72
      %p81 = scmp.eq.s32.totalorder %s19, 0
      %p82 = por %p80, %p81
      %p83 = scmp.ne.s32.totalorder %s71, %s72
      %p84 = scmp.eq.s32.totalorder %s20, 2
      %p85 = por %p83, %p84
      %p87 = scmp.ne.s32.totalorder %s72, %s86
      %p88 = scmp.eq.s32.totalorder %s20, 0
      %p89 = por %p87, %p88
      %s91 = sadd.s32 %s90, 1
      %p94 = scmp.eq.s32.totalorder %s14, 2
      %p95 = scmp.ne.s32.totalorder %s90, %s92
      %p96 = scmp.eq.s32.totalorder %s14, 0
      %p97 = por %p95, %p96
      %p98 = scmp.ne.s32.totalorder %s90, %s92
      %p99 = scmp.eq.s32.totalorder %s19, 2
      %p100 = por %p98, %p99
      %p101 = scmp.ne.s32.totalorder %s92, %s93
      %p102 = scmp.eq.s32.totalorder %s19, 0
      %p103 = por %p101, %p102
      %p104 = scmp.ne.s32.totalorder %s92, %s93
      %p105 = scmp.eq.s32.totalorder %s20, 2
      %p106 = por %p104, %p105
      %p108 = scmp.ne.s32.totalorder %s93, %s107
      %p109 = scmp.eq.s32.totalorder %s20, 0
      %p110 = por %p108, %p109
      %s112 = sadd.s32 %s111, 1
      %p115 = scmp.eq.s32.totalorder %s14, 2
      %p116 = scmp.ne.s32.totalorder %s111, %s113
      %p117 = scmp.eq.s32.totalorder %s14, 0
      %p118 = por %p116, %p117
      %p119 = scmp.ne.s32.totalorder %s111, %s113
      %p120 = scmp.eq.s32.totalorder %s19, 2
      %p121 = por %p119, %p120
      %p122 = scmp.ne.s32.totalorder %s113, %s114
      %p123 = scmp.eq.s32.totalorder %s19, 0
      %p124 = por %p122, %p123
      %p125 = scmp.ne.s32.totalorder %s113, %s114
      %p126 = scmp.eq.s32.totalorder %s20, 2
      %p127 = por %p125, %p126
      %p129 = scmp.ne.s32.totalorder %s114, %s128
      %p130 = scmp.eq.s32.totalorder %s20, 0
      %p131 = por %p129, %p130
      %s132 = ssub.s32 %s14, %s21
      %p133 = scmp.eq.s32.totalorder %s132, 0
      %s135 = sadd.s32 %s134, 1
      %s136 = scalar_select %p133, %s134, %s135
      %p139 = pneg %p133
      %p140 = scmp.eq.s32.totalorder %s14, 2
      %p141 = por %p139, %p140
      %p142 = scmp.ne.s32.totalorder %s134, %s137
      %p143 = scmp.eq.s32.totalorder %s14, 0
      %p144 = por %p142, %p143
      %p145 = scmp.ne.s32.totalorder %s134, %s137
      %p146 = scmp.eq.s32.totalorder %s19, 2
      %p147 = por %p145, %p146
      %p148 = scmp.ne.s32.totalorder %s137, %s138
      %p149 = scmp.eq.s32.totalorder %s19, 0
      %p150 = por %p148, %p149
      %p151 = scmp.ne.s32.totalorder %s137, %s138
      %p152 = scmp.eq.s32.totalorder %s20, 2
      %p153 = por %p151, %p152
      %p155 = scmp.ne.s32.totalorder %s138, %s154
      %p156 = scmp.eq.s32.totalorder %s20, 0
      %p157 = por %p155, %p156
      %p158 = scmp.le.s32.totalorder 1, %s14
      %p159 = scmp.lt.s32.totalorder %s14, 4
      %p160 = pnand %p158, %p159
      %p161 = pneg %p160
      // Predicated region
      $region9: #{tpu_custom_call.1} parent=5 // pred_check
        _
      $region10: #{tpu_custom_call.1} parent=5 // pred_check_branch
        %163 = sbr.rel (%p160) target = $region12
      $region11: #{tpu_custom_call.1} parent=5 // pred_region
        %s164 = ssub.s32 %s14, 1
        // Predicated region
        $region13: #{tpu_custom_call.1} parent=11 // pred_check
          %p165 = pneg %p61
        $region14: #{tpu_custom_call.1} parent=11 // pred_check_branch
          %167 = sbr.rel (%p165) target = $region16
        $region15: #{tpu_custom_call.1} parent=11 // pred_region
          _
        $region16: #{tpu_custom_call.1} parent=11 // pred_fallthru
          _
        // Predicated region
        $region17: #{tpu_custom_call.1} parent=11 // pred_check
          %p168 = pneg %p82
        $region18: #{tpu_custom_call.1} parent=11 // pred_check_branch
          %170 = sbr.rel (%p168) target = $region20
        $region19: #{tpu_custom_call.1} parent=11 // pred_region
          _
        $region20: #{tpu_custom_call.1} parent=11 // pred_fallthru
          _
        // Predicated region
        $region21: #{tpu_custom_call.1} parent=11 // pred_check
          %p171 = pneg %p103
        $region22: #{tpu_custom_call.1} parent=11 // pred_check_branch
          %173 = sbr.rel (%p171) target = $region24
        $region23: #{tpu_custom_call.1} parent=11 // pred_region
          _
        $region24: #{tpu_custom_call.1} parent=11 // pred_fallthru
          _
        // Predicated region
        $region25: #{tpu_custom_call.1} parent=11 // pred_check
          %p174 = pneg %p124
        $region26: #{tpu_custom_call.1} parent=11 // pred_check_branch
          %176 = sbr.rel (%p174) target = $region28
        $region27: #{tpu_custom_call.1} parent=11 // pred_region
          _
        $region28: #{tpu_custom_call.1} parent=11 // pred_fallthru
          _
      $region12: #{tpu_custom_call.1} parent=5 // pred_fallthru
        _
      %p177 = scmp.lt.s32.totalorder %s14, 3
      // Predicated region
      $region29: #{tpu_custom_call.1} parent=5 // pred_check
        %p178 = pneg %p177
      $region30: #{tpu_custom_call.1} parent=5 // pred_check_branch
        %180 = sbr.rel (%p178) target = $region32
      $region31: #{tpu_custom_call.1} parent=5 // pred_region
        // Predicated region
        $region33: #{tpu_custom_call.1} parent=31 // pred_check
          %p181 = pneg %p34
        $region34: #{tpu_custom_call.1} parent=31 // pred_check_branch
          %183 = sbr.rel (%p181) target = $region36
        $region35: #{tpu_custom_call.1} parent=31 // pred_region
          %s184 = sand.u32 %s24, 1
          %s185 = sand.u32 %s24, 1
          %s186 = smul.addr %s185, 16
          %s187 = scalar_lea.vmem [#allocation2], %s186
          %s188 = smul.addr %s14, 8
          %s189 = scalar_lea.vmem %s0, %s188
          // Predicated region
          $region37: #{tpu_custom_call.1} parent=35 // pred_check
            _
          $region38: #{tpu_custom_call.1} parent=35 // pred_check_branch
            %191 = sbr.rel (0) target = $region40
          $region39: #{tpu_custom_call.1} parent=35 // pred_region
            // Predicated region
            $region41: #{tpu_custom_call.1} parent=39 // pred_check
              _
            $region42: #{tpu_custom_call.1} parent=39 // pred_check_branch
              %193 = sbr.rel (0) target = $region44
            $region43: #{tpu_custom_call.1} parent=39 // pred_region
              // Predicated region
              $region56: #{tpu_custom_call.1} parent=43 // pred_check
                _
              $region57: #{tpu_custom_call.1} parent=43 // pred_check_branch
                %210 = sbr.rel (0) target = $region59
              $region58: #{tpu_custom_call.1} parent=43 // pred_region
                loop: start=0, step=1, limit=1
                $region60: #{tpu_custom_call.1} parent=58 // loop_pre_header
                  _
                $region61: #{tpu_custom_call.1} parent=58 // loop_header
                  %s212 = sphi 0, %s216
                  %p213 = scmp.ge.s32.totalorder %s212, 1
                  %s217 = sphi %s189, %s189
                  %s218 = sphi %s187, %s187
                $region62: #{tpu_custom_call.1} parent=58 // loop_header_branch
                  %215 = sbr.rel (%p213) target = $region66
                $region63: #{tpu_custom_call.1} parent=58 // loop_body
                  %v219 = vld [vmem:[%s217] sm:$0xff]
                  %220 = vst [vmem:[%s218] sm:$0xff] %v219
                  %v221 = vld [vmem:[%s217 + $0x18] sm:$0xff]
                  %222 = vst [vmem:[%s218 + $0x8] sm:$0xff] %v221
                $region64: #{tpu_custom_call.1} parent=58 // loop_footer
                  %s216 = sadd.s32 1, %s212
                $region65: #{tpu_custom_call.1} parent=58 // loop_footer_branch
                  %211 = sbr.rel target = $region61
                $region66: #{tpu_custom_call.1} parent=58 // loop_exit
                  _
              $region59: #{tpu_custom_call.1} parent=43 // pred_fallthru
                _
              // Predicated region
              $region67: #{tpu_custom_call.1} parent=43 // pred_check
                _
              $region68: #{tpu_custom_call.1} parent=43 // pred_check_branch
                %224 = sbr.rel target = $region70
              $region69: #{tpu_custom_call.1} parent=43 // pred_region
                _
              $region70: #{tpu_custom_call.1} parent=43 // pred_fallthru
                _
            $region44: #{tpu_custom_call.1} parent=39 // pred_fallthru
              _
            // Predicated region
            $region45: #{tpu_custom_call.1} parent=39 // pred_check
              _
            $region46: #{tpu_custom_call.1} parent=39 // pred_check_branch
              %195 = sbr.rel target = $region48
            $region47: #{tpu_custom_call.1} parent=39 // pred_region
              loop: start=0, step=1, limit=1
              $region49: #{tpu_custom_call.1} parent=47 // loop_pre_header
                _
              $region50: #{tpu_custom_call.1} parent=47 // loop_header
                %s198 = sphi 0, %s202
                %p199 = scmp.ge.s32.totalorder %s198, 1
                %s203 = sphi %s189, %s189
                %s204 = sphi %s187, %s187
              $region51: #{tpu_custom_call.1} parent=47 // loop_header_branch
                %201 = sbr.rel (%p199) target = $region55
              $region52: #{tpu_custom_call.1} parent=47 // loop_body
                %v205 = vld [vmem:[%s203] sm:$0xff]
                %206 = vst [vmem:[%s204] sm:$0xff] %v205
                %v207 = vld [vmem:[%s203 + $0x18] sm:$0xff]
                %208 = vst [vmem:[%s204 + $0x8] sm:$0xff] %v207
              $region53: #{tpu_custom_call.1} parent=47 // loop_footer
                %s202 = sadd.s32 1, %s198
              $region54: #{tpu_custom_call.1} parent=47 // loop_footer_branch
                %197 = sbr.rel target = $region50
              $region55: #{tpu_custom_call.1} parent=47 // loop_exit
                _
            $region48: #{tpu_custom_call.1} parent=39 // pred_fallthru
              _
          $region40: #{tpu_custom_call.1} parent=35 // pred_fallthru
            _
          %225 = vnop
        $region36: #{tpu_custom_call.1} parent=31 // pred_fallthru
          _
      $region32: #{tpu_custom_call.1} parent=5 // pred_fallthru
        _
      %p226 = scmp.le.s32.totalorder 1, %s14
      %p227 = scmp.lt.s32.totalorder %s14, 4
      %p228 = pnand %p226, %p227
      %p229 = pneg %p228
      // Predicated region
      $region71: #{tpu_custom_call.1} parent=5 // pred_check
        _
      $region72: #{tpu_custom_call.1} parent=5 // pred_check_branch
        %231 = sbr.rel (%p228) target = $region74
      $region73: #{tpu_custom_call.1} parent=5 // pred_region
        %s232 = ssub.s32 %s14, 1
        %s233 = sand.u32 %s27, 1
        %s234 = sand.u32 %s27, 1
        %s235 = smul.addr %s234, 16
        %s236 = scalar_lea.vmem [#allocation2], %s235
        // Predicated region
        $region75: #{tpu_custom_call.1} parent=73 // pred_check
          %p237 = pneg %p40
        $region76: #{tpu_custom_call.1} parent=73 // pred_check_branch
          %239 = sbr.rel (%p237) target = $region78
        $region77: #{tpu_custom_call.1} parent=73 // pred_region
          _
        $region78: #{tpu_custom_call.1} parent=73 // pred_fallthru
          _
        %s240 = sand.u32 %s27, 1
        %s241 = sand.u32 %s27, 1
        %s242 = smul.addr %s241, 16
        %s243 = scalar_lea.vmem [#allocation2], %s242
        %p244 = pneg %p40
        %p245 = pneg %p37
        %p246 = pneg %p61
        %p247 = pneg %p58
        %p248 = pneg %p82
        %p249 = pneg %p79
        %p250 = pneg %p103
        %p251 = pneg %p100
        %p252 = pneg %p124
        %p253 = pneg %p121
        %p254 = pneg %p150
        %p255 = pneg %p147
        %s256 = sand.u32 %s137, 1
        %s257 = scalar_lea.sflag [#allocation4], %s256
        %s258 = sand.u32 %s137, 1
        %s259 = smul.addr %s258, 4
        %s260 = scalar_lea.vmem [#allocation3], %s259
        %v261 = vld [vmem:[%s4] sm:$0xff]
        %v262 = vld [vmem:[%s4 + $0x8] sm:$0xff]
        %v263 = vld [vmem:[%s4 + $0x10] sm:$0xff]
        %v264 = vld [vmem:[%s4 + $0x18] sm:$0xff]
        %v265 = vld [vmem:[%s4 + $0x20] sm:$0xff]
        %v266 = vld [vmem:[%s4 + $0x28] sm:$0xff]
        %v267 = vld [vmem:[%s4 + $0x30] sm:$0xff]
        %v268 = vld [vmem:[%s4 + $0x38] sm:$0xff]
        %v269 = vld [vmem:[%s4 + $0x40] sm:$0xf]
        %v270 = vld [vmem:[%s236] sm:$0xff]
        %v271 = vld [vmem:[%s236 + $0x8] sm:$0xff]
        %v272 = vld [vmem:[%s1] sm:$0xff]
        %v273 = vld [vmem:[%s1 + $0x8] sm:$0xff]
        %v274 = vld [vmem:[%s1 + $0x10] sm:$0xff]
        %v275 = vld [vmem:[%s1 + $0x18] sm:$0xff]
        %277 = vset.pattern.permute.xlu0 0
        %278 = vperm.xlu0 %277, %v261
        %v279 = vpop.permute.xlu0 %278
        %282 = vset.pattern.permute.xlu0 0
        %283 = vperm.xlu0 %282, %v262
        %v284 = vpop.permute.xlu0 %283
        %287 = vset.pattern.permute.xlu0 0
        %288 = vperm.xlu0 %287, %v263
        %v289 = vpop.permute.xlu0 %288
        %292 = vset.pattern.permute.xlu0 0
        %293 = vperm.xlu0 %292, %v264
        %v294 = vpop.permute.xlu0 %293
        %vm296 = vcmask 130048
        %v298 = vsel %vm296, %v272, 0
        %v301 = vsel %vm296, %v273, 0
        %v304 = vsel %vm296, %v274, 0
        %v307 = vsel %vm296, %v275, 0
        %309 = vmatprep.subr.mxu0 0.0
        %310 = vmatpush1.msra.mxu0 %v270
        %311 = vmatprep.subr.mxu0 0.0
        %312 = vmatpush1.msra.mxu0 %v271
        %313 = vmatprep.subr.mxu0 0.0
        %314 = vmatpush1.msra.mxu0 0.0
        %315 = vmatprep.subr.mxu0 0.0
        %316 = vmatpush1.msra.mxu0 0.0
        %317 = vmatprep.subr.mxu0 0.0
        %318 = vmatpush1.msra.mxu0 0.0
        %319 = vmatprep.subr.mxu0 0.0
        %320 = vmatpush1.msra.mxu0 0.0
        %321 = vmatprep.subr.mxu0 0.0
        %322 = vmatpush1.msra.mxu0 0.0
        %323 = vmatprep.subr.mxu0 0.0
        %324 = vmatpush1.msra.mxu0 0.0
        %325 = vmatprep.subr.mxu0 0.0
        %326 = vmatpush1.msra.mxu0 0.0
        %327 = vmatprep.subr.mxu0 0.0
        %328 = vmatpush1.msra.mxu0 0.0
        %329 = vmatprep.subr.mxu0 0.0
        %330 = vmatpush1.msra.mxu0 0.0
        %331 = vmatprep.subr.mxu0 0.0
        %332 = vmatpush1.msra.mxu0 0.0
        %333 = vmatprep.subr.mxu0 0.0
        %334 = vmatpush1.msra.mxu0 0.0
        %335 = vmatprep.subr.mxu0 0.0
        %336 = vmatpush1.msra.mxu0 0.0
        %337 = vmatprep.subr.mxu0 0.0
        %338 = vmatpush1.msra.mxu0 0.0
        %339 = vmatprep.subr.mxu0 0.0
        %340 = vmatpush1.msra.mxu0 0.0
        %341 = vmatprep.subr.mxu0 0.0
        %342 = vmatpush1.msra.mxu0 0.0
        %343 = vmatprep.subr.mxu0 0.0
        %344 = vmatpush1.msra.mxu0 0.0
        %345 = vmatprep.subr.mxu0 0.0
        %346 = vmatpush1.msra.mxu0 0.0
        %347 = vmatprep.subr.mxu0 0.0
        %348 = vmatpush1.msra.mxu0 0.0
        %349 = vmatprep.subr.mxu0 0.0
        %350 = vmatpush1.msra.mxu0 0.0
        %351 = vmatprep.subr.mxu0 0.0
        %352 = vmatpush1.msra.mxu0 0.0
        %353 = vmatprep.subr.mxu0 0.0
        %354 = vmatpush1.msra.mxu0 0.0
        %355 = vmatprep.subr.mxu0 0.0
        %356 = vmatpush1.msra.mxu0 0.0
        %357 = vmatprep.subr.mxu0 0.0
        %358 = vmatpush1.msra.mxu0 0.0
        %359 = vmatprep.subr.mxu0 0.0
        %360 = vmatpush1.msra.mxu0 0.0
        %361 = vmatprep.subr.mxu0 0.0
        %362 = vmatpush1.msra.mxu0 0.0
        %363 = vmatprep.subr.mxu0 0.0
        %364 = vmatpush1.msra.mxu0 0.0
        %365 = vmatprep.subr.mxu0 0.0
        %366 = vmatpush1.msra.mxu0 0.0
        %367 = vmatprep.subr.mxu0 0.0
        %368 = vmatpush1.msra.mxu0 0.0
        %369 = vmatprep.subr.mxu0 0.0
        %370 = vmatpush1.msra.mxu0 0.0
        %371 = vmatprep.subr.mxu0 0.0
        %372 = vmatpush1.msra.mxu0 0.0
        %373 = vmatprep.mubr.f32.mxu0 0.0
        %374 = vmatmul.mubr.f32.gmra.mrb[0].mxu0 %v298
        %v375 = vpop.f32.mrb[0].mxu0
        %v376 = vadd.f32 %v279, %v375
        %v377 = vpop.f32.mrb[0].mxu0
        %378 = vmatprep.mubr.f32.mxu0 0.0
        %379 = vmatmul.mubr.f32.gmra.mrb[0].mxu0 %v301
        %v380 = vpop.f32.mrb[0].mxu0
        %v381 = vadd.f32 %v284, %v380
        %v382 = vpop.f32.mrb[0].mxu0
        %383 = vmatprep.mubr.f32.mxu0 0.0
        %384 = vmatmul.mubr.f32.gmra.mrb[0].mxu0 %v304
        %v385 = vpop.f32.mrb[0].mxu0
        %v386 = vadd.f32 %v289, %v385
        %v387 = vpop.f32.mrb[0].mxu0
        %388 = vmatprep.mubr.f32.mxu0 0.0
        %389 = vmatmul.mubr.f32.gmra.mrb[0].mxu0 %v307
        %v390 = vpop.f32.mrb[0].mxu0
        %v391 = vadd.f32 %v294, %v390
        %v392 = vpop.f32.mrb[0].mxu0
        %393 = vdwg.mxu0
        %v394 = vmax.f32 %v376, 0.0
        %v395 = vmax.f32 %v381, 0.0
        %v396 = vmax.f32 %v386, 0.0
        %v397 = vmax.f32 %v391, 0.0
        %v398 = vld [vmem:[%s2] sm:$0xff]
        %v399 = vld [vmem:[%s2 + $0x8] sm:$0xff]
        %v400 = vld [vmem:[%s2 + $0x10] sm:$0xff]
        %v401 = vld [vmem:[%s2 + $0x18] sm:$0xff]
        %403 = vset.pattern.permute.xlu0 0
        %404 = vperm.xlu0 %403, %v265
        %v405 = vpop.permute.xlu0 %404
        %408 = vset.pattern.permute.xlu0 0
        %409 = vperm.xlu0 %408, %v266
        %v410 = vpop.permute.xlu0 %409
        %413 = vset.pattern.permute.xlu0 0
        %414 = vperm.xlu0 %413, %v267
        %v415 = vpop.permute.xlu0 %414
        %418 = vset.pattern.permute.xlu0 0
        %419 = vperm.xlu0 %418, %v268
        %v420 = vpop.permute.xlu0 %419
        %vm422 = vcmask 261120
        %v424 = vsel %vm422, %v398, 0
        %v427 = vsel %vm422, %v399, 0
        %v430 = vsel %vm422, %v400, 0
        %v433 = vsel %vm422, %v401, 0
        %435 = vmatprep.subr.mxu0 0.0
        %436 = vmatpush1.msra.mxu0 %v394
        %437 = vmatprep.subr.mxu0 0.0
        %438 = vmatpush1.msra.mxu0 %v395
        %439 = vmatprep.subr.mxu0 0.0
        %440 = vmatpush1.msra.mxu0 %v396
        %441 = vmatprep.subr.mxu0 0.0
        %442 = vmatpush1.msra.mxu0 %v397
        %443 = vmatprep.subr.mxu0 0.0
        %444 = vmatpush1.msra.mxu0 0.0
        %445 = vmatprep.subr.mxu0 0.0
        %446 = vmatpush1.msra.mxu0 0.0
        %447 = vmatprep.subr.mxu0 0.0
        %448 = vmatpush1.msra.mxu0 0.0
        %449 = vmatprep.subr.mxu0 0.0
        %450 = vmatpush1.msra.mxu0 0.0
        %451 = vmatprep.subr.mxu0 0.0
        %452 = vmatpush1.msra.mxu0 0.0
        %453 = vmatprep.subr.mxu0 0.0
        %454 = vmatpush1.msra.mxu0 0.0
        %455 = vmatprep.subr.mxu0 0.0
        %456 = vmatpush1.msra.mxu0 0.0
        %457 = vmatprep.subr.mxu0 0.0
        %458 = vmatpush1.msra.mxu0 0.0
        %459 = vmatprep.subr.mxu0 0.0
        %460 = vmatpush1.msra.mxu0 0.0
        %461 = vmatprep.subr.mxu0 0.0
        %462 = vmatpush1.msra.mxu0 0.0
        %463 = vmatprep.subr.mxu0 0.0
        %464 = vmatpush1.msra.mxu0 0.0
        %465 = vmatprep.subr.mxu0 0.0
        %466 = vmatpush1.msra.mxu0 0.0
        %467 = vmatprep.subr.mxu0 0.0
        %468 = vmatpush1.msra.mxu0 0.0
        %469 = vmatprep.subr.mxu0 0.0
        %470 = vmatpush1.msra.mxu0 0.0
        %471 = vmatprep.subr.mxu0 0.0
        %472 = vmatpush1.msra.mxu0 0.0
        %473 = vmatprep.subr.mxu0 0.0
        %474 = vmatpush1.msra.mxu0 0.0
        %475 = vmatprep.subr.mxu0 0.0
        %476 = vmatpush1.msra.mxu0 0.0
        %477 = vmatprep.subr.mxu0 0.0
        %478 = vmatpush1.msra.mxu0 0.0
        %479 = vmatprep.subr.mxu0 0.0
        %480 = vmatpush1.msra.mxu0 0.0
        %481 = vmatprep.subr.mxu0 0.0
        %482 = vmatpush1.msra.mxu0 0.0
        %483 = vmatprep.subr.mxu0 0.0
        %484 = vmatpush1.msra.mxu0 0.0
        %485 = vmatprep.subr.mxu0 0.0
        %486 = vmatpush1.msra.mxu0 0.0
        %487 = vmatprep.subr.mxu0 0.0
        %488 = vmatpush1.msra.mxu0 0.0
        %489 = vmatprep.subr.mxu0 0.0
        %490 = vmatpush1.msra.mxu0 0.0
        %491 = vmatprep.subr.mxu0 0.0
        %492 = vmatpush1.msra.mxu0 0.0
        %493 = vmatprep.subr.mxu0 0.0
        %494 = vmatpush1.msra.mxu0 0.0
        %495 = vmatprep.subr.mxu0 0.0
        %496 = vmatpush1.msra.mxu0 0.0
        %497 = vmatprep.subr.mxu0 0.0
        %498 = vmatpush1.msra.mxu0 0.0
        %499 = vmatprep.mubr.f32.mxu0 0.0
        %500 = vmatmul.mubr.f32.gmra.mrb[0].mxu0 %v424
        %v501 = vpop.f32.mrb[0].mxu0
        %v502 = vadd.f32 %v405, %v501
        %v503 = vpop.f32.mrb[0].mxu0
        %504 = vmatprep.mubr.f32.mxu0 0.0
        %505 = vmatmul.mubr.f32.gmra.mrb[0].mxu0 %v427
        %v506 = vpop.f32.mrb[0].mxu0
        %v507 = vadd.f32 %v410, %v506
        %v508 = vpop.f32.mrb[0].mxu0
        %509 = vmatprep.mubr.f32.mxu0 0.0
        %510 = vmatmul.mubr.f32.gmra.mrb[0].mxu0 %v430
        %v511 = vpop.f32.mrb[0].mxu0
        %v512 = vadd.f32 %v415, %v511
        %v513 = vpop.f32.mrb[0].mxu0
        %514 = vmatprep.mubr.f32.mxu0 0.0
        %515 = vmatmul.mubr.f32.gmra.mrb[0].mxu0 %v433
        %v516 = vpop.f32.mrb[0].mxu0
        %v517 = vadd.f32 %v420, %v516
        %v518 = vpop.f32.mrb[0].mxu0
        %519 = vdwg.mxu0
        %v520 = vmax.f32 %v502, 0.0
        %v521 = vmax.f32 %v507, 0.0
        %v522 = vmax.f32 %v512, 0.0
        %v523 = vmax.f32 %v517, 0.0
        %v524 = vld [vmem:[%s3] sm:$0xf]
        %526 = vset.pattern.permute.xlu0 0
        %527 = vperm.xlu0 %526, %v269
        %v528 = vpop.permute.xlu0 %527
        %v531 = vsel %vm422, %v524, 0
        %533 = vmatprep.subr.mxu0 0.0
        %534 = vmatpush1.msra.mxu0 %v520
        %535 = vmatprep.subr.mxu0 0.0
        %536 = vmatpush1.msra.mxu0 %v521
        %537 = vmatprep.subr.mxu0 0.0
        %538 = vmatpush1.msra.mxu0 %v522
        %539 = vmatprep.subr.mxu0 0.0
        %540 = vmatpush1.msra.mxu0 %v523
        %541 = vmatprep.subr.mxu0 0.0
        %542 = vmatpush1.msra.mxu0 0.0
        %543 = vmatprep.subr.mxu0 0.0
        %544 = vmatpush1.msra.mxu0 0.0
        %545 = vmatprep.subr.mxu0 0.0
        %546 = vmatpush1.msra.mxu0 0.0
        %547 = vmatprep.subr.mxu0 0.0
        %548 = vmatpush1.msra.mxu0 0.0
        %549 = vmatprep.subr.mxu0 0.0
        %550 = vmatpush1.msra.mxu0 0.0
        %551 = vmatprep.subr.mxu0 0.0
        %552 = vmatpush1.msra.mxu0 0.0
        %553 = vmatprep.subr.mxu0 0.0
        %554 = vmatpush1.msra.mxu0 0.0
        %555 = vmatprep.subr.mxu0 0.0
        %556 = vmatpush1.msra.mxu0 0.0
        %557 = vmatprep.subr.mxu0 0.0
        %558 = vmatpush1.msra.mxu0 0.0
        %559 = vmatprep.subr.mxu0 0.0
        %560 = vmatpush1.msra.mxu0 0.0
        %561 = vmatprep.subr.mxu0 0.0
        %562 = vmatpush1.msra.mxu0 0.0
        %563 = vmatprep.subr.mxu0 0.0
        %564 = vmatpush1.msra.mxu0 0.0
        %565 = vmatprep.subr.mxu0 0.0
        %566 = vmatpush1.msra.mxu0 0.0
        %567 = vmatprep.subr.mxu0 0.0
        %568 = vmatpush1.msra.mxu0 0.0
        %569 = vmatprep.subr.mxu0 0.0
        %570 = vmatpush1.msra.mxu0 0.0
        %571 = vmatprep.subr.mxu0 0.0
        %572 = vmatpush1.msra.mxu0 0.0
        %573 = vmatprep.subr.mxu0 0.0
        %574 = vmatpush1.msra.mxu0 0.0
        %575 = vmatprep.subr.mxu0 0.0
        %576 = vmatpush1.msra.mxu0 0.0
        %577 = vmatprep.subr.mxu0 0.0
        %578 = vmatpush1.msra.mxu0 0.0
        %579 = vmatprep.subr.mxu0 0.0
        %580 = vmatpush1.msra.mxu0 0.0
        %581 = vmatprep.subr.mxu0 0.0
        %582 = vmatpush1.msra.mxu0 0.0
        %583 = vmatprep.subr.mxu0 0.0
        %584 = vmatpush1.msra.mxu0 0.0
        %585 = vmatprep.subr.mxu0 0.0
        %586 = vmatpush1.msra.mxu0 0.0
        %587 = vmatprep.subr.mxu0 0.0
        %588 = vmatpush1.msra.mxu0 0.0
        %589 = vmatprep.subr.mxu0 0.0
        %590 = vmatpush1.msra.mxu0 0.0
        %591 = vmatprep.subr.mxu0 0.0
        %592 = vmatpush1.msra.mxu0 0.0
        %593 = vmatprep.subr.mxu0 0.0
        %594 = vmatpush1.msra.mxu0 0.0
        %595 = vmatprep.subr.mxu0 0.0
        %596 = vmatpush1.msra.mxu0 0.0
        %597 = vmatprep.mubr.f32.mxu0 0.0
        %598 = vmatmul.mubr.f32.gmra.mrb[0].mxu0 %v531
        %v599 = vpop.f32.mrb[0].mxu0
        %v600 = vadd.f32 %v528, %v599
        %v601 = vpop.f32.mrb[0].mxu0
        %602 = vdwg.mxu0
        %603 = vst [vmem:[%s260] sm:$0xf] %v600
        %s604 = sand.u32 %s137, 1
        %s605 = scalar_lea.sflag [#allocation4], %s604
        %s606 = sand.u32 %s137, 1
        %s607 = smul.addr %s606, 4
        %s608 = scalar_lea.vmem [#allocation3], %s607
        // Predicated region
        $region79: #{tpu_custom_call.1} parent=73 // pred_check
          %p609 = pneg %p147
        $region80: #{tpu_custom_call.1} parent=73 // pred_check_branch
          %611 = sbr.rel (%p609) target = $region82
        $region81: #{tpu_custom_call.1} parent=73 // pred_region
          %s613 = ssub.s32 64, 64
          %614 = vsyncadd %s605, %s613
          %s615 = smul.addr %s19, 64
          %s616 = scalar_lea.hbm %s5, %s615
          %s618 = sshll.u32 %s608, 4
          %s619 = int_to_ptr.vmem [resolvable:$true] %s618
          %621 = dma.vmem_to_hbm [thread:$0]  %s619, 64, %s616, %s605
        $region82: #{tpu_custom_call.1} parent=73 // pred_fallthru
          _
      $region74: #{tpu_custom_call.1} parent=5 // pred_fallthru
        _
      %p622 = scmp.le.s32.totalorder 2, %s14
      // Predicated region
      $region83: #{tpu_custom_call.1} parent=5 // pred_check
        %p623 = pneg %p622
      $region84: #{tpu_custom_call.1} parent=5 // pred_check_branch
        %625 = sbr.rel (%p623) target = $region86
      $region85: #{tpu_custom_call.1} parent=5 // pred_region
        %s626 = ssub.s32 %s14, 2
        // Predicated region
        $region87: #{tpu_custom_call.1} parent=85 // pred_check
          %p627 = pneg %p153
        $region88: #{tpu_custom_call.1} parent=85 // pred_check_branch
          %629 = sbr.rel (%p627) target = $region90
        $region89: #{tpu_custom_call.1} parent=85 // pred_region
          %s630 = sand.u32 %s138, 1
          %s631 = scalar_lea.sflag [#allocation4], %s630
          %s632 = sand.u32 %s138, 1
          %s633 = smul.addr %s632, 4
          %s634 = scalar_lea.vmem [#allocation3], %s633
          %635 = dma.done %s631, 64
        $region90: #{tpu_custom_call.1} parent=85 // pred_fallthru
          _
      $region86: #{tpu_custom_call.1} parent=5 // pred_fallthru
        _
    $region6: #{tpu_custom_call.1} parent=1 // loop_footer
      %s18 = sadd.s32 1, %s14
    $region7: #{tpu_custom_call.1} parent=1 // loop_footer_branch
      %13 = sbr.rel target = $region3
    $region8: #{tpu_custom_call.1} parent=1 // loop_exit
      _
    %636 = vsyncpa [#allocation4], 1
    %s637 = scalar_lea.sflag [#allocation4], 1
    %638 = vsyncpa %s637, 1

</llo_original>
